<compile_context>
chip_gen: v6e
topology: v6e:2x2x1
jax: 0.10.0
libtpu: 0.0.40
codegen_flags: <defaults>
</compile_context>

<pallas_src>
import functools

import jax
import jax.numpy as jnp
from jax.experimental import pallas as pl
from jax.experimental.pallas import tpu as pltpu


def gcn_kernel(adj_ref, feat_ref, w1_ref, b1_ref, out_ref, acc_ref, *,
               tk, feat_resident):
    k = pl.program_id(1)

    @pl.when(k == 0)
    def _():
        acc_ref[...] = jnp.zeros_like(acc_ref)

    # Select this step's feature k-chunk.
    if feat_resident:
        start = pl.multiple_of(k * tk, tk)
        f = feat_ref[pl.ds(start, tk), :]          # (tk, Fp) bf16, VMEM-resident
    else:
        f = feat_ref[...]                          # streamed (tk, Fp) bf16 tile

    # Main reduction: bf16 x bf16 on the MXU, f32 accumulation in VMEM scratch.
    acc_ref[...] += jnp.dot(adj_ref[...].astype(jnp.bfloat16), f,
                            preferred_element_type=jnp.float32)

    # Finalize once per output row-tile: tiny second matmul + bias + relu + store.
    @pl.when(k == pl.num_programs(1) - 1)
    def _():
        h = jnp.dot(acc_ref[...].astype(jnp.bfloat16), w1_ref[...],
                    preferred_element_type=jnp.float32)      # (tm, Hp)
        out_ref[...] = jnp.maximum(h + b1_ref[...], 0.0).astype(out_ref.dtype)


def _round_up(x, m):
    return ((x + m - 1) // m) * m


def _pick_tile(np_, candidates):
    for c in candidates:
        if c <= np_ and np_ % c == 0:
            return c
    return 128  # Np is always a multiple of 128


def gcn_forward(adj, features, w1, b1, *, tm=None, tk=None,
                vmem_budget=40 * 1024 * 1024):
    """relu((adj @ features) @ w1.T + b1) as one fused Pallas kernel.

    adj: (N, N) f32, features: (N, F) f32, w1: (H, F) f32, b1: (H,) f32 -> (N, H) f32.
    """
    N, F = features.shape
    H = w1.shape[0]
    assert adj.shape == (N, N) and w1.shape == (H, F) and b1.shape == (H,)

    Np = _round_up(N, 128)
    Fp = _round_up(F, 128)
    Hp = _round_up(H, 128)

    # Adaptive tiling: big tiles (better HBM roofline, fewer grid steps) but keep
    # at least 2 row-tiles so v7x's two TensorCores both get work.
    if tm is None:
        tm = _pick_tile(Np, (512, 256, 128))
        if Np // tm < 2 and tm > 128:
            tm //= 2
    if tk is None:
        tk = _pick_tile(Np, (1024, 512, 256, 128))
    assert Np % tm == 0 and Np % tk == 0

    # adj stays f32 (cast to bf16 per-tile inside the kernel): no extra full-HBM
    # wrapper pass.  Pad only if N is not 128-aligned.
    adj_p = adj.astype(jnp.float32)
    if Np != N:
        adj_p = jnp.zeros((Np, Np), jnp.float32).at[:N, :N].set(adj_p)

    # Small operands: pad + cast in the wrapper (one cheap pass over N*F / F*H).
    feat_p = jnp.zeros((Np, Fp), jnp.bfloat16).at[:N, :F].set(
        features.astype(jnp.bfloat16))
    w1t_p = jnp.zeros((Fp, Hp), jnp.bfloat16).at[:F, :H].set(
        w1.T.astype(jnp.bfloat16))
    b1_p = jnp.zeros((1, Hp), jnp.float32).at[0, :H].set(b1.astype(jnp.float32))

    # VMEM accounting (count double-buffering of pipelined operands).
    fixed_vmem = (2 * tm * tk * 4        # adj f32 tiles (double-buffered)
                  + 2 * Fp * Hp * 2      # W1^T (bf16, resident)
                  + 2 * Hp * 4           # bias
                  + 2 * tm * Hp * 4      # output tile
                  + tm * Fp * 4)         # f32 accumulator scratch
    feat_resident_vmem = 2 * Np * Fp * 2
    feat_resident = fixed_vmem + feat_resident_vmem <= vmem_budget

    if feat_resident:
        feat_spec = pl.BlockSpec((Np, Fp), lambda i, k: (0, 0))   # one HBM read
        feat_hbm_bytes = Np * Fp * 2
        vmem_used = fixed_vmem + feat_resident_vmem
    else:
        feat_spec = pl.BlockSpec((tk, Fp), lambda i, k: (k, 0))   # streamed fallback
        feat_hbm_bytes = (Np // tm) * Np * Fp * 2
        vmem_used = fixed_vmem + 2 * tk * Fp * 2

    # Size the VMEM limit from real usage; cap below v7x's 64 MiB physical VMEM.
    vmem_limit = int(min(48 * 1024 * 1024, max(2 * vmem_used, 16 * 1024 * 1024)))

    cost = pl.CostEstimate(
        flops=2 * Np * Np * Fp + 2 * Np * Fp * Hp,
        transcendentals=0,
        bytes_accessed=(Np * Np * 4           # adj read once (f32)
                        + feat_hbm_bytes
                        + Fp * Hp * 2 + Hp * 4
                        + Np * Hp * 4),       # output
    )

    kernel = functools.partial(gcn_kernel, tk=tk, feat_resident=feat_resident)

    out_p = pl.pallas_call(
        kernel,
        out_shape=jax.ShapeDtypeStruct((Np, Hp), jnp.float32),
        grid_spec=pltpu.PrefetchScalarGridSpec(
            num_scalar_prefetch=0,
            grid=(Np // tm, Np // tk),
            in_specs=[
                pl.BlockSpec((tm, tk), lambda i, k: (i, k)),   # adj tile (f32, streamed)
                feat_spec,                                      # features (bf16)
                pl.BlockSpec((Fp, Hp), lambda i, k: (0, 0)),    # W1^T (resident)
                pl.BlockSpec((1, Hp), lambda i, k: (0, 0)),     # bias (resident)
            ],
            out_specs=pl.BlockSpec((tm, Hp), lambda i, k: (i, 0)),
            scratch_shapes=[pltpu.VMEM((tm, Fp), jnp.float32)],
        ),
        compiler_params=pltpu.CompilerParams(
            dimension_semantics=("parallel", "arbitrary"),
            vmem_limit_bytes=vmem_limit,
        ),
        cost_estimate=cost,
    )(adj_p, feat_p, w1t_p, b1_p)

    return out_p[:N, :H]


def init_linear(key, in_features, out_features):
    """Mimic torch.nn.Linear default init: U(-1/sqrt(in), 1/sqrt(in))."""
    kw, kb = jax.random.split(key)
    bound = 1.0 / jnp.sqrt(jnp.float32(in_features))
    w = jax.random.uniform(kw, (out_features, in_features), jnp.float32,
                           minval=-bound, maxval=bound)
    b = jax.random.uniform(kb, (out_features,), jnp.float32,
                           minval=-bound, maxval=bound)
    return w, b


if __name__ == "__main__":
    key = jax.random.PRNGKey(0)
    k_adj, k_feat, k_g1, k_g2 = jax.random.split(key, 4)

    # Small shapes consistent with the module defaults (input 207, hidden 100).
    N, input_size, hidden_size, output_size = 256, 207, 100, 207

    adj = jax.random.normal(k_adj, (N, N), jnp.float32)
    features = jax.random.normal(k_feat, (N, input_size), jnp.float32)

    # gcn1.linear params (used in forward)
    w1, b1 = init_linear(k_g1, input_size, hidden_size)
    # gcn2.linear params (constructed in __init__ but unused in forward)
    w2, b2 = init_linear(k_g2, hidden_size, output_size)

    out = gcn_forward(adj, features, w1, b1)
    out = jax.block_until_ready(out)

    # Pure-JAX reference mirroring the kernel's bf16 quantization of inputs,
    # aggregated activations and weights (all accumulation in f32).
    f32 = jnp.float32
    adj_q = adj.astype(jnp.bfloat16).astype(f32)
    feat_q = features.astype(jnp.bfloat16).astype(f32)
    agg = jnp.matmul(adj_q, feat_q, precision=jax.lax.Precision.HIGHEST)
    agg_q = agg.astype(jnp.bfloat16).astype(f32)
    w1_q = w1.astype(jnp.bfloat16).astype(f32)
    ref = jnp.maximum(
        jnp.matmul(agg_q, w1_q.T, precision=jax.lax.Precision.HIGHEST) + b1, 0.0)

    assert out.shape == (N, hidden_size)
    max_err = float(jnp.max(jnp.abs(out - ref)))
    assert jnp.allclose(out, ref, atol=5e-2, rtol=2e-2), max_err

    print("KERNEL_OK")
</pallas_src>

<mosaic_0001>
module attributes {stable_mosaic.version = 11 : i64} {
  func.func @gcn_kernel(%arg0: i32, %arg1: i32, %arg2: memref<128x256xf32, #tpu.memory_space<vmem>>, %arg3: memref<256x256xbf16, #tpu.memory_space<vmem>>, %arg4: memref<256x128xbf16, #tpu.memory_space<vmem>>, %arg5: memref<1x128xf32, #tpu.memory_space<vmem>>, %arg6: memref<128x128xf32, #tpu.memory_space<vmem>>, %arg7: memref<128x256xf32, #tpu.memory_space<vmem>>) attributes {dimension_semantics = [#tpu.dimension_semantics<parallel>, #tpu.dimension_semantics<arbitrary>], iteration_bounds = array<i64: 2, 1>, scalar_prefetch = 0 : i64, scratch_operands = 1 : i64, tpu.core_type = #tpu.core_type<tc>, window_params = [{transform_indices = @transform_0, window_bounds = array<i64: 128, 256>}, {pipeline_mode = #tpu.pipeline_mode<synchronous>, transform_indices = @transform_1, window_bounds = array<i64: 256, 256>}, {pipeline_mode = #tpu.pipeline_mode<synchronous>, transform_indices = @transform_2, window_bounds = array<i64: 256, 128>}, {pipeline_mode = #tpu.pipeline_mode<synchronous>, transform_indices = @transform_3, window_bounds = array<i64: 1, 128>}, {transform_indices = @transform_4, window_bounds = array<i64: 128, 128>}]} {
    %c0_i32 = arith.constant 0 : i32
    %0 = arith.cmpi eq, %arg1, %c0_i32 : i32
    %1 = arith.extui %0 : i1 to i32
    %c0_i32_0 = arith.constant 0 : i32
    %2 = arith.cmpi ne, %1, %c0_i32_0 : i32
    scf.if %2 {
      %cst_9 = arith.constant 0.000000e+00 : f32
      %16 = vector.broadcast %cst_9 : f32 to vector<128x256xf32>
      %c0_10 = arith.constant 0 : index
      %c0_11 = arith.constant 0 : index
      %17 = vector.load %arg7[%c0_10, %c0_11] : memref<128x256xf32, #tpu.memory_space<vmem>>, vector<128x256xf32>
      tpu.vector_store %arg7[%c0_10, %c0_11], %16 {strides = array<i32>} : memref<128x256xf32, #tpu.memory_space<vmem>>, vector<128x256xf32>,
    } else {
    }
    %c256_i32 = arith.constant 256 : i32
    %3 = arith.muli %arg1, %c256_i32 : i32
    %4 = tpu.assume_multiple %3, 256 : i32
    %5 = arith.index_cast %4 : i32 to index
    %c0 = arith.constant 0 : index
    %6 = vector.load %arg3[%5, %c0] : memref<256x256xbf16, #tpu.memory_space<vmem>>, vector<256x256xbf16>
    %c0_1 = arith.constant 0 : index
    %c0_2 = arith.constant 0 : index
    %7 = vector.load %arg7[%c0_1, %c0_2] : memref<128x256xf32, #tpu.memory_space<vmem>>, vector<128x256xf32>
    %c0_3 = arith.constant 0 : index
    %c0_4 = arith.constant 0 : index
    %8 = vector.load %arg2[%c0_3, %c0_4] : memref<128x256xf32, #tpu.memory_space<vmem>>, vector<128x256xf32>
    %9 = arith.truncf %8 : vector<128x256xf32> to vector<128x256xbf16>
    %cst = arith.constant dense<0.000000e+00> : vector<128x256xf32>
    %10 = tpu.matmul %9, %6, %cst {dimension_numbers = #tpu.dot_dimension_numbers<[1], [0], [0], [1], [0, 0, 1, 1], [], []>} : vector<128x256xbf16>, vector<256x256xbf16>, vector<128x256xf32> -> vector<128x256xf32>
    %11 = arith.addf %7, %10 : vector<128x256xf32>
    %c0_5 = arith.constant 0 : index
    %c0_6 = arith.constant 0 : index
    %12 = vector.load %arg7[%c0_5, %c0_6] : memref<128x256xf32, #tpu.memory_space<vmem>>, vector<128x256xf32>
    tpu.vector_store %arg7[%c0_5, %c0_6], %11 {strides = array<i32>} : memref<128x256xf32, #tpu.memory_space<vmem>>, vector<128x256xf32>,
    %c0_i32_7 = arith.constant 0 : i32
    %13 = arith.cmpi eq, %arg1, %c0_i32_7 : i32
    %14 = arith.extui %13 : i1 to i32
    %c0_i32_8 = arith.constant 0 : i32
    %15 = arith.cmpi ne, %14, %c0_i32_8 : i32
    scf.if %15 {
      %c0_9 = arith.constant 0 : index
      %c0_10 = arith.constant 0 : index
      %16 = vector.load %arg7[%c0_9, %c0_10] : memref<128x256xf32, #tpu.memory_space<vmem>>, vector<128x256xf32>
      %17 = arith.truncf %16 : vector<128x256xf32> to vector<128x256xbf16>
      %c0_11 = arith.constant 0 : index
      %c0_12 = arith.constant 0 : index
      %18 = vector.load %arg4[%c0_11, %c0_12] : memref<256x128xbf16, #tpu.memory_space<vmem>>, vector<256x128xbf16>
      %cst_13 = arith.constant dense<0.000000e+00> : vector<128x128xf32>
      %19 = tpu.matmul %17, %18, %cst_13 {dimension_numbers = #tpu.dot_dimension_numbers<[1], [0], [0], [1], [0, 0, 1, 1], [], []>} : vector<128x256xbf16>, vector<256x128xbf16>, vector<128x128xf32> -> vector<128x128xf32>
      %c0_14 = arith.constant 0 : index
      %c0_15 = arith.constant 0 : index
      %20 = vector.load %arg5[%c0_14, %c0_15] : memref<1x128xf32, #tpu.memory_space<vmem>>, vector<1x128xf32>
      %21 = vector.broadcast %20 : vector<1x128xf32> to vector<128x128xf32>
      %22 = arith.addf %19, %21 : vector<128x128xf32>
      %cst_16 = arith.constant 0.000000e+00 : f32
      %23 = vector.broadcast %cst_16 : f32 to vector<128x128xf32>
      %24 = arith.maximumf %22, %23 : vector<128x128xf32>
      %c0_17 = arith.constant 0 : index
      %c0_18 = arith.constant 0 : index
      %25 = vector.load %arg6[%c0_17, %c0_18] : memref<128x128xf32, #tpu.memory_space<vmem>>, vector<128x128xf32>
      tpu.vector_store %arg6[%c0_17, %c0_18], %24 {strides = array<i32>} : memref<128x128xf32, #tpu.memory_space<vmem>>, vector<128x128xf32>,
    } else {
    }
    return
  }
  func.func @transform_0(%arg0: i32, %arg1: i32) -> (i32, i32) {
    %c0_i32 = arith.constant 0 : i32
    return %arg0, %arg1 : i32, i32
  }
  func.func @transform_1(%arg0: i32, %arg1: i32) -> (i32, i32) {
    %c0_i32 = arith.constant 0 : i32
    %c0_i32_0 = arith.constant 0 : i32
    %c0_i32_1 = arith.constant 0 : i32
    return %c0_i32, %c0_i32_0 : i32, i32
  }
  func.func @transform_2(%arg0: i32, %arg1: i32) -> (i32, i32) {
    %c0_i32 = arith.constant 0 : i32
    %c0_i32_0 = arith.constant 0 : i32
    %c0_i32_1 = arith.constant 0 : i32
    return %c0_i32, %c0_i32_0 : i32, i32
  }
  func.func @transform_3(%arg0: i32, %arg1: i32) -> (i32, i32) {
    %c0_i32 = arith.constant 0 : i32
    %c0_i32_0 = arith.constant 0 : i32
    %c0_i32_1 = arith.constant 0 : i32
    return %c0_i32, %c0_i32_0 : i32, i32
  }
  func.func @transform_4(%arg0: i32, %arg1: i32) -> (i32, i32) {
    %c0_i32 = arith.constant 0 : i32
    %c0_i32_0 = arith.constant 0 : i32
    return %arg0, %c0_i32 : i32, i32
  }
}

</mosaic_0001>

<llo_original>
// kernel: tpu_custom_call.1
$region0: #{tpu_custom_call.1}
  #allocation0 [shape = 'u32[]', space=smem, size = 0x4, offset = 0x4, fixed_abs, tag = 'smem constant byte address 0x4 - core index']
  #allocation1 [shape = 'u32[144,128]{1,0:T(1,128)}', space=vmem, size = 0x12000, scoped, tag = 'internal scratch']
  #allocation2 [shape = 'f32[128,256]{1,0:T(8,128)}', space=vmem, size = 0x20000, scoped, tag = 'scratch operand']
  %s0 = inlined_call_operand.hbm [shape: f32[256,256], index: 0, kind: input, shape index: {}]
  %s1 = inlined_call_operand.hbm [shape: bf16[256,256], index: 1, kind: input, shape index: {}]
  %s2 = inlined_call_operand.hbm [shape: bf16[256,128], index: 2, kind: input, shape index: {}]
  %s3 = inlined_call_operand.vmem [shape: f32[1,128], index: 3, kind: input, shape index: {}]
  %s4 = inlined_call_operand.hbm [shape: f32[256,128], index: 4, kind: output, shape index: {}]
  %s5 = sld [smem:[#allocation0]]
  $region69: #{tpu_custom_call.1} parent=0
    _
  %s7 = ssub.s32 1, %s5
  %s8 = scalar_select 0, %s7, %s5
  $region1: #{tpu_custom_call.1} parent=0
    #allocation3 [shape = 'u8[262144]{0}', space=vmem, size = 0x40000, scoped, tag = 'input window, operand 0']
    #allocation4 [shape = 's32[2]{0}', space=sflag, size = 0x8, scoped, tag = 'scoped memory for tpu_custom_call.1']
    #allocation5 [shape = 's32[2]{0}', space=sflag, size = 0x8, scoped, tag = 'scoped memory for tpu_custom_call.1']
    #allocation6 [shape = 'u8[131072]{0}', space=vmem, size = 0x20000, scoped, tag = 'input window, operand 1, single buffered']
    #allocation7 [shape = 's32[1]{0}', space=sflag, size = 0x4, scoped, tag = 'scoped memory for tpu_custom_call.1']
    #allocation8 [shape = 'u8[65536]{0}', space=vmem, size = 0x10000, scoped, tag = 'input window, operand 2, single buffered']
    #allocation9 [shape = 'u8[131072]{0}', space=vmem, size = 0x20000, scoped, tag = 'output window, operand 0']
    %9 = vsyncpa [#allocation4], 0
    %s10 = scalar_lea.sflag [#allocation4], 1
    %11 = vsyncpa %s10, 0
    %12 = vsyncpa [#allocation7], 0
    %13 = vsyncpa [#allocation5], 0
    %s14 = scalar_lea.sflag [#allocation5], 1
    %15 = vsyncpa %s14, 0
    loop: start=0, step=1, limit=4
    $region2: #{tpu_custom_call.1} parent=1 // loop_pre_header
      _
    $region3: #{tpu_custom_call.1} parent=1 // loop_header
      %s17 = sphi 0, %s21
      %p18 = scmp.ge.s32.totalorder %s17, 4
      %s24 = sphi 0, %s36
      %s25 = sphi 0, %s32
      %s26 = sphi 0, %s24
      %s27 = sphi 0, %s25
      %s28 = sphi 0, %s26
      %s29 = sphi 0, %s27
      %s41 = sphi 0, %s43
      %s44 = sphi 0, %s41
      %s45 = sphi 0, %s44
      %s61 = sphi 0, %s45
      %s65 = sphi 0, %s65
      %s67 = sphi 0, %s65
      %s68 = sphi 0, %s67
      %s82 = sphi 0, %s68
      %s86 = sphi 0, %s86
      %s88 = sphi 0, %s86
      %s89 = sphi 0, %s88
      %s103 = sphi 0, %s89
      %s107 = sphi 0, %s107
      %s109 = sphi 0, %s107
      %s110 = sphi 0, %s109
      %s124 = sphi 0, %s110
      %s130 = sphi 0, %s132
      %s133 = sphi 0, %s130
      %s134 = sphi 0, %s133
      %s150 = sphi 0, %s134
    $region4: #{tpu_custom_call.1} parent=1 // loop_header_branch
      %20 = sbr.rel (%p18) target = $region8
    $region5: #{tpu_custom_call.1} parent=1 // loop_body
      %s22 = ssub.s32 %s17, 1
      %s23 = ssub.s32 %s17, 2
      %s30 = sadd.s32 1, %s25
      %p31 = scmp.ge.s32.totalorder %s30, 1
      %s32 = scalar_select %p31, 0, %s30
      %s33 = sadd.s32 1, %s24
      %s34 = scalar_select %p31, %s33, %s24
      %p35 = scmp.ge.s32.totalorder %s34, 2
      %s36 = scalar_select %p35, 0, %s34
      %s37 = ssub.s32 %s24, %s36
      %s38 = ssub.s32 %s25, %s32
      %s39 = sor.u32 %s37, %s38
      %p40 = scmp.eq.s32.totalorder %s39, 0
      %s42 = sadd.s32 %s41, 1
      %s43 = scalar_select %p40, %s41, %s42
      %p46 = pneg %p40
      %p47 = scmp.eq.s32.totalorder %s17, 1
      %p48 = por %p46, %p47
      %p49 = scmp.ne.s32.totalorder %s41, %s44
      %p50 = scmp.eq.s32.totalorder %s17, 0
      %p51 = por %p49, %p50
      %p52 = scmp.ne.s32.totalorder %s41, %s44
      %p53 = scmp.eq.s32.totalorder %s22, 1
      %p54 = por %p52, %p53
      %p55 = scmp.ne.s32.totalorder %s44, %s45
      %p56 = scmp.eq.s32.totalorder %s22, 0
      %p57 = por %p55, %p56
      %p58 = scmp.ne.s32.totalorder %s44, %s45
      %p59 = scmp.eq.s32.totalorder %s23, 1
      %p60 = por %p58, %p59
      %p62 = scmp.ne.s32.totalorder %s45, %s61
      %p63 = scmp.eq.s32.totalorder %s23, 0
      %p64 = por %p62, %p63
      %s66 = sadd.s32 %s65, 1
      %p69 = scmp.eq.s32.totalorder %s17, 1
      %p70 = scmp.ne.s32.totalorder %s65, %s67
      %p71 = scmp.eq.s32.totalorder %s17, 0
      %p72 = por %p70, %p71
      %p73 = scmp.ne.s32.totalorder %s65, %s67
      %p74 = scmp.eq.s32.totalorder %s22, 1
      %p75 = por %p73, %p74
      %p76 = scmp.ne.s32.totalorder %s67, %s68
      %p77 = scmp.eq.s32.totalorder %s22, 0
      %p78 = por %p76, %p77
      %p79 = scmp.ne.s32.totalorder %s67, %s68
      %p80 = scmp.eq.s32.totalorder %s23, 1
      %p81 = por %p79, %p80
      %p83 = scmp.ne.s32.totalorder %s68, %s82
      %p84 = scmp.eq.s32.totalorder %s23, 0
      %p85 = por %p83, %p84
      %s87 = sadd.s32 %s86, 1
      %p90 = scmp.eq.s32.totalorder %s17, 1
      %p91 = scmp.ne.s32.totalorder %s86, %s88
      %p92 = scmp.eq.s32.totalorder %s17, 0
      %p93 = por %p91, %p92
      %p94 = scmp.ne.s32.totalorder %s86, %s88
      %p95 = scmp.eq.s32.totalorder %s22, 1
      %p96 = por %p94, %p95
      %p97 = scmp.ne.s32.totalorder %s88, %s89
      %p98 = scmp.eq.s32.totalorder %s22, 0
      %p99 = por %p97, %p98
      %p100 = scmp.ne.s32.totalorder %s88, %s89
      %p101 = scmp.eq.s32.totalorder %s23, 1
      %p102 = por %p100, %p101
      %p104 = scmp.ne.s32.totalorder %s89, %s103
      %p105 = scmp.eq.s32.totalorder %s23, 0
      %p106 = por %p104, %p105
      %s108 = sadd.s32 %s107, 1
      %p111 = scmp.eq.s32.totalorder %s17, 1
      %p112 = scmp.ne.s32.totalorder %s107, %s109
      %p113 = scmp.eq.s32.totalorder %s17, 0
      %p114 = por %p112, %p113
      %p115 = scmp.ne.s32.totalorder %s107, %s109
      %p116 = scmp.eq.s32.totalorder %s22, 1
      %p117 = por %p115, %p116
      %p118 = scmp.ne.s32.totalorder %s109, %s110
      %p119 = scmp.eq.s32.totalorder %s22, 0
      %p120 = por %p118, %p119
      %p121 = scmp.ne.s32.totalorder %s109, %s110
      %p122 = scmp.eq.s32.totalorder %s23, 1
      %p123 = por %p121, %p122
      %p125 = scmp.ne.s32.totalorder %s110, %s124
      %p126 = scmp.eq.s32.totalorder %s23, 0
      %p127 = por %p125, %p126
      %s128 = ssub.s32 %s24, %s36
      %p129 = scmp.eq.s32.totalorder %s128, 0
      %s131 = sadd.s32 %s130, 1
      %s132 = scalar_select %p129, %s130, %s131
      %p135 = pneg %p129
      %p136 = scmp.eq.s32.totalorder %s17, 1
      %p137 = por %p135, %p136
      %p138 = scmp.ne.s32.totalorder %s130, %s133
      %p139 = scmp.eq.s32.totalorder %s17, 0
      %p140 = por %p138, %p139
      %p141 = scmp.ne.s32.totalorder %s130, %s133
      %p142 = scmp.eq.s32.totalorder %s22, 1
      %p143 = por %p141, %p142
      %p144 = scmp.ne.s32.totalorder %s133, %s134
      %p145 = scmp.eq.s32.totalorder %s22, 0
      %p146 = por %p144, %p145
      %p147 = scmp.ne.s32.totalorder %s133, %s134
      %p148 = scmp.eq.s32.totalorder %s23, 1
      %p149 = por %p147, %p148
      %p151 = scmp.ne.s32.totalorder %s134, %s150
      %p152 = scmp.eq.s32.totalorder %s23, 0
      %p153 = por %p151, %p152
      %p154 = scmp.le.s32.totalorder 1, %s17
      %p155 = scmp.lt.s32.totalorder %s17, 3
      %p156 = pnand %p154, %p155
      %p157 = pneg %p156
      // Predicated region
      $region9: #{tpu_custom_call.1} parent=5 // pred_check
        _
      $region10: #{tpu_custom_call.1} parent=5 // pred_check_branch
        %159 = sbr.rel (%p156) target = $region12
      $region11: #{tpu_custom_call.1} parent=5 // pred_region
        %s160 = ssub.s32 %s17, 1
        // Predicated region
        $region13: #{tpu_custom_call.1} parent=11 // pred_check
          %p161 = pneg %p78
        $region14: #{tpu_custom_call.1} parent=11 // pred_check_branch
          %163 = sbr.rel (%p161) target = $region16
        $region15: #{tpu_custom_call.1} parent=11 // pred_region
          %s165 = ssub.s32 4096, 4096
          %166 = vsyncadd [#allocation7], %s165
          %s167 = sshll.u32 [#allocation6], 4
          %s168 = int_to_ptr.vmem [resolvable:$true] %s167
          %173 = dma.hbm_to_vmem [thread:$0]  %s1, 4096, %s168, [#allocation7], 128, 128, 8
        $region16: #{tpu_custom_call.1} parent=11 // pred_fallthru
          _
        // Predicated region
        $region17: #{tpu_custom_call.1} parent=11 // pred_check
          %p174 = pneg %p99
        $region18: #{tpu_custom_call.1} parent=11 // pred_check_branch
          %176 = sbr.rel (%p174) target = $region20
        $region19: #{tpu_custom_call.1} parent=11 // pred_region
          %s178 = ssub.s32 2048, 2048
          %179 = vsyncadd [#allocation7], %s178
          %s180 = sshll.u32 [#allocation8], 4
          %s181 = int_to_ptr.vmem [resolvable:$true] %s180
          %186 = dma.hbm_to_vmem [thread:$0]  %s2, 2048, %s181, [#allocation7], 64, 64, 4
        $region20: #{tpu_custom_call.1} parent=11 // pred_fallthru
          _
        // Predicated region
        $region21: #{tpu_custom_call.1} parent=11 // pred_check
          %p187 = pneg %p120
        $region22: #{tpu_custom_call.1} parent=11 // pred_check_branch
          %189 = sbr.rel (%p187) target = $region24
        $region23: #{tpu_custom_call.1} parent=11 // pred_region
          _
        $region24: #{tpu_custom_call.1} parent=11 // pred_fallthru
          _
      $region12: #{tpu_custom_call.1} parent=5 // pred_fallthru
        _
      %p190 = scmp.lt.s32.totalorder %s17, 2
      // Predicated region
      $region25: #{tpu_custom_call.1} parent=5 // pred_check
        %p191 = pneg %p190
      $region26: #{tpu_custom_call.1} parent=5 // pred_check_branch
        %193 = sbr.rel (%p191) target = $region28
      $region27: #{tpu_custom_call.1} parent=5 // pred_region
        // Predicated region
        $region29: #{tpu_custom_call.1} parent=27 // pred_check
          %p194 = pneg %p51
        $region30: #{tpu_custom_call.1} parent=27 // pred_check_branch
          %196 = sbr.rel (%p194) target = $region32
        $region31: #{tpu_custom_call.1} parent=27 // pred_region
          %s197 = sand.u32 %s41, 1
          %s198 = scalar_lea.sflag [#allocation4], %s197
          %s199 = sand.u32 %s41, 1
          %s200 = smul.addr %s199, 256
          %s201 = scalar_lea.vmem [#allocation3], %s200
          %s202 = smul.u32 16, %s24
          %s203 = smul.u32 2, %s25
          %s205 = ssub.s32 4096, 4096
          %206 = vsyncadd %s198, %s205
          %s207 = smul.addr %s202, 2
          %s208 = sadd.s32 %s203, %s207
          %s209 = smul.addr %s208, 128
          %s210 = scalar_lea.hbm %s0, %s209
          %s211 = sshll.u32 %s201, 4
          %s212 = int_to_ptr.vmem [resolvable:$true] %s211
          %217 = dma.hbm_to_vmem [thread:$0]  %s210, 4096, %s212, %s198, 256, 256, 16
        $region32: #{tpu_custom_call.1} parent=27 // pred_fallthru
          _
      $region28: #{tpu_custom_call.1} parent=5 // pred_fallthru
        _
      %p218 = scmp.le.s32.totalorder 1, %s17
      %p219 = scmp.lt.s32.totalorder %s17, 3
      %p220 = pnand %p218, %p219
      %p221 = pneg %p220
      // Predicated region
      $region33: #{tpu_custom_call.1} parent=5 // pred_check
        _
      $region34: #{tpu_custom_call.1} parent=5 // pred_check_branch
        %223 = sbr.rel (%p220) target = $region36
      $region35: #{tpu_custom_call.1} parent=5 // pred_region
        %s224 = ssub.s32 %s17, 1
        %s225 = sand.u32 %s44, 1
        %s226 = scalar_lea.sflag [#allocation4], %s225
        %s227 = sand.u32 %s44, 1
        %s228 = smul.addr %s227, 256
        %s229 = scalar_lea.vmem [#allocation3], %s228
        // Predicated region
        $region37: #{tpu_custom_call.1} parent=35 // pred_check
          %p230 = pneg %p57
        $region38: #{tpu_custom_call.1} parent=35 // pred_check_branch
          %232 = sbr.rel (%p230) target = $region40
        $region39: #{tpu_custom_call.1} parent=35 // pred_region
          %233 = dma.done %s226, 4096
        $region40: #{tpu_custom_call.1} parent=35 // pred_fallthru
          _
        // Predicated region
        $region41: #{tpu_custom_call.1} parent=35 // pred_check
          %p234 = pneg %p78
        $region42: #{tpu_custom_call.1} parent=35 // pred_check_branch
          %236 = sbr.rel (%p234) target = $region44
        $region43: #{tpu_custom_call.1} parent=35 // pred_region
          %237 = dma.done [#allocation7], 4096
        $region44: #{tpu_custom_call.1} parent=35 // pred_fallthru
          _
        // Predicated region
        $region45: #{tpu_custom_call.1} parent=35 // pred_check
          %p238 = pneg %p99
        $region46: #{tpu_custom_call.1} parent=35 // pred_check_branch
          %240 = sbr.rel (%p238) target = $region48
        $region47: #{tpu_custom_call.1} parent=35 // pred_region
          %241 = dma.done [#allocation7], 2048
        $region48: #{tpu_custom_call.1} parent=35 // pred_fallthru
          _
        %s242 = sand.u32 %s44, 1
        %s243 = scalar_lea.sflag [#allocation4], %s242
        %s244 = sand.u32 %s44, 1
        %s245 = smul.addr %s244, 256
        %s246 = scalar_lea.vmem [#allocation3], %s245
        %p247 = pneg %p57
        %p248 = pneg %p54
        %p249 = pneg %p78
        %p250 = pneg %p75
        %p251 = pneg %p99
        %p252 = pneg %p96
        %p253 = pneg %p120
        %p254 = pneg %p117
        %p255 = pneg %p146
        %p256 = pneg %p143
        %s257 = sand.u32 %s133, 1
        %s258 = scalar_lea.sflag [#allocation5], %s257
        %s259 = sand.u32 %s133, 1
        %s260 = smul.addr %s259, 128
        %s261 = scalar_lea.vmem [#allocation9], %s260
        %s262 = smul.u32 16, %s26
        %s263 = smul.u32 2, %s27
        %s264 = smul.u32 16, %s26
        %p266 = scmp.eq.s32.totalorder %s27, 0
        // Predicated region
        $region49: #{tpu_custom_call.1} parent=35 // pred_check
          %p267 = pneg %p266
        $region50: #{tpu_custom_call.1} parent=35 // pred_check_branch
          %269 = sbr.rel (%p267) target = $region52
        $region51: #{tpu_custom_call.1} parent=35 // pred_region
          %270 = vst [vmem:[#allocation2] sm:$0xff] 0.0
          %271 = vst [vmem:[#allocation2 + $0x8] sm:$0xff] 0.0
          %272 = vst [vmem:[#allocation2 + $0x10] sm:$0xff] 0.0
          %273 = vst [vmem:[#allocation2 + $0x18] sm:$0xff] 0.0
          %274 = vst [vmem:[#allocation2 + $0x20] sm:$0xff] 0.0
          %275 = vst [vmem:[#allocation2 + $0x28] sm:$0xff] 0.0
          %276 = vst [vmem:[#allocation2 + $0x30] sm:$0xff] 0.0
          %277 = vst [vmem:[#allocation2 + $0x38] sm:$0xff] 0.0
          %278 = vst [vmem:[#allocation2 + $0x40] sm:$0xff] 0.0
          %279 = vst [vmem:[#allocation2 + $0x48] sm:$0xff] 0.0
          %280 = vst [vmem:[#allocation2 + $0x50] sm:$0xff] 0.0
          %281 = vst [vmem:[#allocation2 + $0x58] sm:$0xff] 0.0
          %282 = vst [vmem:[#allocation2 + $0x60] sm:$0xff] 0.0
          %283 = vst [vmem:[#allocation2 + $0x68] sm:$0xff] 0.0
          %284 = vst [vmem:[#allocation2 + $0x70] sm:$0xff] 0.0
          %285 = vst [vmem:[#allocation2 + $0x78] sm:$0xff] 0.0
          %286 = vst [vmem:[#allocation2 + $0x80] sm:$0xff] 0.0
          %287 = vst [vmem:[#allocation2 + $0x88] sm:$0xff] 0.0
          %288 = vst [vmem:[#allocation2 + $0x90] sm:$0xff] 0.0
          %289 = vst [vmem:[#allocation2 + $0x98] sm:$0xff] 0.0
          %290 = vst [vmem:[#allocation2 + $0xa0] sm:$0xff] 0.0
          %291 = vst [vmem:[#allocation2 + $0xa8] sm:$0xff] 0.0
          %292 = vst [vmem:[#allocation2 + $0xb0] sm:$0xff] 0.0
          %293 = vst [vmem:[#allocation2 + $0xb8] sm:$0xff] 0.0
          %294 = vst [vmem:[#allocation2 + $0xc0] sm:$0xff] 0.0
          %295 = vst [vmem:[#allocation2 + $0xc8] sm:$0xff] 0.0
          %296 = vst [vmem:[#allocation2 + $0xd0] sm:$0xff] 0.0
          %297 = vst [vmem:[#allocation2 + $0xd8] sm:$0xff] 0.0
          %298 = vst [vmem:[#allocation2 + $0xe0] sm:$0xff] 0.0
          %299 = vst [vmem:[#allocation2 + $0xe8] sm:$0xff] 0.0
          %300 = vst [vmem:[#allocation2 + $0xf0] sm:$0xff] 0.0
          %301 = vst [vmem:[#allocation2 + $0xf8] sm:$0xff] 0.0
        $region52: #{tpu_custom_call.1} parent=35 // pred_fallthru
          _
        %s302 = smul.u32 %s27, 256
        %s303 = sshra.s32 %s302, 3
        %s304 = sand.u32 %s302, 7
        %s305 = smul.u32 %s303, 2
        %s306 = smul.addr %s305, 4
        %s307 = scalar_lea.vmem [#allocation6], %s306
        %v308 = vld [vmem:[%s307] sm:$0xff]
        %v309 = vld [vmem:[%s307 + $0x8] sm:$0xff]
        %v310 = vld [vmem:[%s307 + $0x10] sm:$0xff]
        %v311 = vld [vmem:[%s307 + $0x18] sm:$0xff]
        %v312 = vld [vmem:[%s307 + $0x20] sm:$0xff]
        %v313 = vld [vmem:[%s307 + $0x28] sm:$0xff]
        %v314 = vld [vmem:[%s307 + $0x30] sm:$0xff]
        %v315 = vld [vmem:[%s307 + $0x38] sm:$0xff]
        %v316 = vld [vmem:[%s307 + $0x40] sm:$0xff]
        %v317 = vld [vmem:[%s307 + $0x48] sm:$0xff]
        %v318 = vld [vmem:[%s307 + $0x50] sm:$0xff]
        %v319 = vld [vmem:[%s307 + $0x58] sm:$0xff]
        %v320 = vld [vmem:[%s307 + $0x60] sm:$0xff]
        %v321 = vld [vmem:[%s307 + $0x68] sm:$0xff]
        %v322 = vld [vmem:[%s307 + $0x70] sm:$0xff]
        %v323 = vld [vmem:[%s307 + $0x78] sm:$0xff]
        %v324 = vld [vmem:[%s307 + $0x80] sm:$0xff]
        %v325 = vld [vmem:[%s307 + $0x88] sm:$0xff]
        %v326 = vld [vmem:[%s307 + $0x90] sm:$0xff]
        %v327 = vld [vmem:[%s307 + $0x98] sm:$0xff]
        %v328 = vld [vmem:[%s307 + $0xa0] sm:$0xff]
        %v329 = vld [vmem:[%s307 + $0xa8] sm:$0xff]
        %v330 = vld [vmem:[%s307 + $0xb0] sm:$0xff]
        %v331 = vld [vmem:[%s307 + $0xb8] sm:$0xff]
        %v332 = vld [vmem:[%s307 + $0xc0] sm:$0xff]
        %v333 = vld [vmem:[%s307 + $0xc8] sm:$0xff]
        %v334 = vld [vmem:[%s307 + $0xd0] sm:$0xff]
        %v335 = vld [vmem:[%s307 + $0xd8] sm:$0xff]
        %v336 = vld [vmem:[%s307 + $0xe0] sm:$0xff]
        %v337 = vld [vmem:[%s307 + $0xe8] sm:$0xff]
        %v338 = vld [vmem:[%s307 + $0xf0] sm:$0xff]
        %v339 = vld [vmem:[%s307 + $0xf8] sm:$0xff]
        %v340 = vld [vmem:[#allocation2] sm:$0xff]
        %v341 = vld [vmem:[#allocation2 + $0x8] sm:$0xff]
        %v342 = vld [vmem:[#allocation2 + $0x10] sm:$0xff]
        %v343 = vld [vmem:[#allocation2 + $0x18] sm:$0xff]
        %v344 = vld [vmem:[#allocation2 + $0x20] sm:$0xff]
        %v345 = vld [vmem:[#allocation2 + $0x28] sm:$0xff]
        %v346 = vld [vmem:[#allocation2 + $0x30] sm:$0xff]
        %v347 = vld [vmem:[#allocation2 + $0x38] sm:$0xff]
        %v348 = vld [vmem:[#allocation2 + $0x40] sm:$0xff]
        %v349 = vld [vmem:[#allocation2 + $0x48] sm:$0xff]
        %v350 = vld [vmem:[#allocation2 + $0x50] sm:$0xff]
        %v351 = vld [vmem:[#allocation2 + $0x58] sm:$0xff]
        %v352 = vld [vmem:[#allocation2 + $0x60] sm:$0xff]
        %v353 = vld [vmem:[#allocation2 + $0x68] sm:$0xff]
        %v354 = vld [vmem:[#allocation2 + $0x70] sm:$0xff]
        %v355 = vld [vmem:[#allocation2 + $0x78] sm:$0xff]
        %v356 = vld [vmem:[#allocation2 + $0x80] sm:$0xff]
        %v357 = vld [vmem:[#allocation2 + $0x88] sm:$0xff]
        %v358 = vld [vmem:[#allocation2 + $0x90] sm:$0xff]
        %v359 = vld [vmem:[#allocation2 + $0x98] sm:$0xff]
        %v360 = vld [vmem:[#allocation2 + $0xa0] sm:$0xff]
        %v361 = vld [vmem:[#allocation2 + $0xa8] sm:$0xff]
        %v362 = vld [vmem:[#allocation2 + $0xb0] sm:$0xff]
        %v363 = vld [vmem:[#allocation2 + $0xb8] sm:$0xff]
        %v364 = vld [vmem:[#allocation2 + $0xc0] sm:$0xff]
        %v365 = vld [vmem:[#allocation2 + $0xc8] sm:$0xff]
        %v366 = vld [vmem:[#allocation2 + $0xd0] sm:$0xff]
        %v367 = vld [vmem:[#allocation2 + $0xd8] sm:$0xff]
        %v368 = vld [vmem:[#allocation2 + $0xe0] sm:$0xff]
        %v369 = vld [vmem:[#allocation2 + $0xe8] sm:$0xff]
        %v370 = vld [vmem:[#allocation2 + $0xf0] sm:$0xff]
        %v371 = vld [vmem:[#allocation2 + $0xf8] sm:$0xff]
        %v372 = vld [vmem:[%s229] sm:$0xff]
        %v373 = vld [vmem:[%s229 + $0x8] sm:$0xff]
        %v374 = vld [vmem:[%s229 + $0x10] sm:$0xff]
        %v375 = vld [vmem:[%s229 + $0x18] sm:$0xff]
        %v376 = vld [vmem:[%s229 + $0x20] sm:$0xff]
        %v377 = vld [vmem:[%s229 + $0x28] sm:$0xff]
        %v378 = vld [vmem:[%s229 + $0x30] sm:$0xff]
        %v379 = vld [vmem:[%s229 + $0x38] sm:$0xff]
        %v380 = vld [vmem:[%s229 + $0x40] sm:$0xff]
        %v381 = vld [vmem:[%s229 + $0x48] sm:$0xff]
        %v382 = vld [vmem:[%s229 + $0x50] sm:$0xff]
        %v383 = vld [vmem:[%s229 + $0x58] sm:$0xff]
        %v384 = vld [vmem:[%s229 + $0x60] sm:$0xff]
        %v385 = vld [vmem:[%s229 + $0x68] sm:$0xff]
        %v386 = vld [vmem:[%s229 + $0x70] sm:$0xff]
        %v387 = vld [vmem:[%s229 + $0x78] sm:$0xff]
        %v388 = vld [vmem:[%s229 + $0x80] sm:$0xff]
        %v389 = vld [vmem:[%s229 + $0x88] sm:$0xff]
        %v390 = vld [vmem:[%s229 + $0x90] sm:$0xff]
        %v391 = vld [vmem:[%s229 + $0x98] sm:$0xff]
        %v392 = vld [vmem:[%s229 + $0xa0] sm:$0xff]
        %v393 = vld [vmem:[%s229 + $0xa8] sm:$0xff]
        %v394 = vld [vmem:[%s229 + $0xb0] sm:$0xff]
        %v395 = vld [vmem:[%s229 + $0xb8] sm:$0xff]
        %v396 = vld [vmem:[%s229 + $0xc0] sm:$0xff]
        %v397 = vld [vmem:[%s229 + $0xc8] sm:$0xff]
        %v398 = vld [vmem:[%s229 + $0xd0] sm:$0xff]
        %v399 = vld [vmem:[%s229 + $0xd8] sm:$0xff]
        %v400 = vld [vmem:[%s229 + $0xe0] sm:$0xff]
        %v401 = vld [vmem:[%s229 + $0xe8] sm:$0xff]
        %v402 = vld [vmem:[%s229 + $0xf0] sm:$0xff]
        %v403 = vld [vmem:[%s229 + $0xf8] sm:$0xff]
        %v404 = vpack.c.bf16 %v374, %v372
        %v405 = vpack.c.bf16 %v375, %v373
        %v406 = vpack.c.bf16 %v378, %v376
        %v407 = vpack.c.bf16 %v379, %v377
        %v408 = vpack.c.bf16 %v382, %v380
        %v409 = vpack.c.bf16 %v383, %v381
        %v410 = vpack.c.bf16 %v386, %v384
        %v411 = vpack.c.bf16 %v387, %v385
        %v412 = vpack.c.bf16 %v390, %v388
        %v413 = vpack.c.bf16 %v391, %v389
        %v414 = vpack.c.bf16 %v394, %v392
        %v415 = vpack.c.bf16 %v395, %v393
        %v416 = vpack.c.bf16 %v398, %v396
        %v417 = vpack.c.bf16 %v399, %v397
        %v418 = vpack.c.bf16 %v402, %v400
        %v419 = vpack.c.bf16 %v403, %v401
        %v452 = vunpack.c.l.b16 %v308
        %v453 = vunpack.c.h.b16 %v308
        %v454 = vunpack.c.l.b16 %v309
        %v455 = vunpack.c.h.b16 %v309
        %v456 = vunpack.c.l.b16 %v310
        %v457 = vunpack.c.h.b16 %v310
        %v458 = vunpack.c.l.b16 %v311
        %v459 = vunpack.c.h.b16 %v311
        %v460 = vunpack.c.l.b16 %v312
        %v461 = vunpack.c.h.b16 %v312
        %v462 = vunpack.c.l.b16 %v313
        %v463 = vunpack.c.h.b16 %v313
        %v464 = vunpack.c.l.b16 %v314
        %v465 = vunpack.c.h.b16 %v314
        %v466 = vunpack.c.l.b16 %v315
        %v467 = vunpack.c.h.b16 %v315
        %v468 = vunpack.c.l.b16 %v316
        %v469 = vunpack.c.h.b16 %v316
        %v470 = vunpack.c.l.b16 %v317
        %v471 = vunpack.c.h.b16 %v317
        %v472 = vunpack.c.l.b16 %v318
        %v473 = vunpack.c.h.b16 %v318
        %v474 = vunpack.c.l.b16 %v319
        %v475 = vunpack.c.h.b16 %v319
        %v476 = vunpack.c.l.b16 %v320
        %v477 = vunpack.c.h.b16 %v320
        %v478 = vunpack.c.l.b16 %v321
        %v479 = vunpack.c.h.b16 %v321
        %v480 = vunpack.c.l.b16 %v322
        %v481 = vunpack.c.h.b16 %v322
        %v482 = vunpack.c.l.b16 %v323
        %v483 = vunpack.c.h.b16 %v323
        %v484 = vunpack.c.l.b16 %v324
        %v485 = vunpack.c.h.b16 %v324
        %v486 = vunpack.c.l.b16 %v325
        %v487 = vunpack.c.h.b16 %v325
        %v488 = vunpack.c.l.b16 %v326
        %v489 = vunpack.c.h.b16 %v326
        %v490 = vunpack.c.l.b16 %v327
        %v491 = vunpack.c.h.b16 %v327
        %v492 = vunpack.c.l.b16 %v328
        %v493 = vunpack.c.h.b16 %v328
        %v494 = vunpack.c.l.b16 %v329
        %v495 = vunpack.c.h.b16 %v329
        %v496 = vunpack.c.l.b16 %v330
        %v497 = vunpack.c.h.b16 %v330
        %v498 = vunpack.c.l.b16 %v331
        %v499 = vunpack.c.h.b16 %v331
        %v500 = vunpack.c.l.b16 %v332
        %v501 = vunpack.c.h.b16 %v332
        %v502 = vunpack.c.l.b16 %v333
        %v503 = vunpack.c.h.b16 %v333
        %v504 = vunpack.c.l.b16 %v334
        %v505 = vunpack.c.h.b16 %v334
        %v506 = vunpack.c.l.b16 %v335
        %v507 = vunpack.c.h.b16 %v335
        %v508 = vunpack.c.l.b16 %v336
        %v509 = vunpack.c.h.b16 %v336
        %v510 = vunpack.c.l.b16 %v337
        %v511 = vunpack.c.h.b16 %v337
        %v512 = vunpack.c.l.b16 %v338
        %v513 = vunpack.c.h.b16 %v338
        %v514 = vunpack.c.l.b16 %v339
        %v515 = vunpack.c.h.b16 %v339
        %v516 = vpack.c.b16 %v454, %v452
        %v517 = vpack.c.b16 %v455, %v453
        %v518 = vpack.c.b16 %v458, %v456
        %v519 = vpack.c.b16 %v459, %v457
        %v520 = vpack.c.b16 %v462, %v460
        %v521 = vpack.c.b16 %v463, %v461
        %v522 = vpack.c.b16 %v466, %v464
        %v523 = vpack.c.b16 %v467, %v465
        %v524 = vpack.c.b16 %v470, %v468
        %v525 = vpack.c.b16 %v471, %v469
        %v526 = vpack.c.b16 %v474, %v472
        %v527 = vpack.c.b16 %v475, %v473
        %v528 = vpack.c.b16 %v478, %v476
        %v529 = vpack.c.b16 %v479, %v477
        %v530 = vpack.c.b16 %v482, %v480
        %v531 = vpack.c.b16 %v483, %v481
        %v532 = vpack.c.b16 %v486, %v484
        %v533 = vpack.c.b16 %v487, %v485
        %v534 = vpack.c.b16 %v490, %v488
        %v535 = vpack.c.b16 %v491, %v489
        %v536 = vpack.c.b16 %v494, %v492
        %v537 = vpack.c.b16 %v495, %v493
        %v538 = vpack.c.b16 %v498, %v496
        %v539 = vpack.c.b16 %v499, %v497
        %v540 = vpack.c.b16 %v502, %v500
        %v541 = vpack.c.b16 %v503, %v501
        %v542 = vpack.c.b16 %v506, %v504
        %v543 = vpack.c.b16 %v507, %v505
        %v544 = vpack.c.b16 %v510, %v508
        %v545 = vpack.c.b16 %v511, %v509
        %v546 = vpack.c.b16 %v514, %v512
        %v547 = vpack.c.b16 %v515, %v513
        %580 = vmatprep.subr.bf16.mxu0 %v531
        %581 = vmatpush1.bf16.msra.mxu0 %v530
        %582 = vmatprep.subr.bf16.mxu0 %v529
        %583 = vmatpush1.bf16.msra.mxu0 %v528
        %584 = vmatprep.subr.bf16.mxu0 %v527
        %585 = vmatpush1.bf16.msra.mxu0 %v526
        %586 = vmatprep.subr.bf16.mxu0 %v525
        %587 = vmatpush1.bf16.msra.mxu0 %v524
        %588 = vmatprep.subr.bf16.mxu0 %v523
        %589 = vmatpush1.bf16.msra.mxu0 %v522
        %590 = vmatprep.subr.bf16.mxu0 %v521
        %591 = vmatpush1.bf16.msra.mxu0 %v520
        %592 = vmatprep.subr.bf16.mxu0 %v519
        %593 = vmatpush1.bf16.msra.mxu0 %v518
        %594 = vmatprep.subr.bf16.mxu0 %v517
        %595 = vmatpush1.bf16.msra.mxu0 %v516
        %596 = vmatprep.subr.bf16.mxu0 %v547
        %597 = vmatpush2.bf16.msra.mxu0 %v546
        %598 = vmatprep.subr.bf16.mxu0 %v545
        %599 = vmatpush2.bf16.msra.mxu0 %v544
        %600 = vmatprep.subr.bf16.mxu0 %v543
        %601 = vmatpush2.bf16.msra.mxu0 %v542
        %602 = vmatprep.subr.bf16.mxu0 %v541
        %603 = vmatpush2.bf16.msra.mxu0 %v540
        %604 = vmatprep.subr.bf16.mxu0 %v539
        %605 = vmatpush2.bf16.msra.mxu0 %v538
        %606 = vmatprep.subr.bf16.mxu0 %v537
        %607 = vmatpush2.bf16.msra.mxu0 %v536
        %608 = vmatprep.subr.bf16.mxu0 %v535
        %609 = vmatpush2.bf16.msra.mxu0 %v534
        %610 = vmatprep.subr.bf16.mxu0 %v533
        %611 = vmatpush2.bf16.msra.mxu0 %v532
        %612 = vmatprep.mubr.bf16.mxu0 %v405
        %613 = vmatmul.mubr.bf16.gmra.mxu0 %v404
        %v614 = vpop.f32.mrf.mxu0
        %v615 = vadd.f32 0.0, %v614
        %v616 = vpop.f32.mrf.mxu0
        %v617 = vadd.f32 0.0, %v616
        %v618 = vpop.f32.mrf.mxu0
        %v619 = vadd.f32 0.0, %v618
        %v620 = vpop.f32.mrf.mxu0
        %v621 = vadd.f32 0.0, %v620
        %622 = vmatprep.mubr.bf16.mxu0 %v407
        %623 = vmatmul.mubr.bf16.gmra.mxu0 %v406
        %v624 = vpop.f32.mrf.mxu0
        %v625 = vadd.f32 0.0, %v624
        %v626 = vpop.f32.mrf.mxu0
        %v627 = vadd.f32 0.0, %v626
        %v628 = vpop.f32.mrf.mxu0
        %v629 = vadd.f32 0.0, %v628
        %v630 = vpop.f32.mrf.mxu0
        %v631 = vadd.f32 0.0, %v630
        %632 = vmatprep.mubr.bf16.mxu0 %v409
        %633 = vmatmul.mubr.bf16.gmra.mxu0 %v408
        %v634 = vpop.f32.mrf.mxu0
        %v635 = vadd.f32 0.0, %v634
        %v636 = vpop.f32.mrf.mxu0
        %v637 = vadd.f32 0.0, %v636
        %v638 = vpop.f32.mrf.mxu0
        %v639 = vadd.f32 0.0, %v638
        %v640 = vpop.f32.mrf.mxu0
        %v641 = vadd.f32 0.0, %v640
        %642 = vmatprep.mubr.bf16.mxu0 %v411
        %643 = vmatmul.mubr.bf16.gmra.mxu0 %v410
        %v644 = vpop.f32.mrf.mxu0
        %v645 = vadd.f32 0.0, %v644
        %v646 = vpop.f32.mrf.mxu0
        %v647 = vadd.f32 0.0, %v646
        %v648 = vpop.f32.mrf.mxu0
        %v649 = vadd.f32 0.0, %v648
        %v650 = vpop.f32.mrf.mxu0
        %v651 = vadd.f32 0.0, %v650
        %652 = vmatprep.mubr.bf16.mxu0 %v413
        %653 = vmatmul.mubr.bf16.gmra.mxu0 %v412
        %v654 = vpop.f32.mrf.mxu0
        %v655 = vadd.f32 0.0, %v654
        %v656 = vpop.f32.mrf.mxu0
        %v657 = vadd.f32 0.0, %v656
        %v658 = vpop.f32.mrf.mxu0
        %v659 = vadd.f32 0.0, %v658
        %v660 = vpop.f32.mrf.mxu0
        %v661 = vadd.f32 0.0, %v660
        %662 = vmatprep.mubr.bf16.mxu0 %v415
        %663 = vmatmul.mubr.bf16.gmra.mxu0 %v414
        %v664 = vpop.f32.mrf.mxu0
        %v665 = vadd.f32 0.0, %v664
        %v666 = vpop.f32.mrf.mxu0
        %v667 = vadd.f32 0.0, %v666
        %v668 = vpop.f32.mrf.mxu0
        %v669 = vadd.f32 0.0, %v668
        %v670 = vpop.f32.mrf.mxu0
        %v671 = vadd.f32 0.0, %v670
        %672 = vmatprep.mubr.bf16.mxu0 %v417
        %673 = vmatmul.mubr.bf16.gmra.mxu0 %v416
        %v674 = vpop.f32.mrf.mxu0
        %v675 = vadd.f32 0.0, %v674
        %v676 = vpop.f32.mrf.mxu0
        %v677 = vadd.f32 0.0, %v676
        %v678 = vpop.f32.mrf.mxu0
        %v679 = vadd.f32 0.0, %v678
        %v680 = vpop.f32.mrf.mxu0
        %v681 = vadd.f32 0.0, %v680
        %682 = vmatprep.mubr.bf16.mxu0 %v419
        %683 = vmatmul.mubr.bf16.gmra.mxu0 %v418
        %v684 = vpop.f32.mrf.mxu0
        %v685 = vadd.f32 0.0, %v684
        %v686 = vpop.f32.mrf.mxu0
        %v687 = vadd.f32 0.0, %v686
        %v688 = vpop.f32.mrf.mxu0
        %v689 = vadd.f32 0.0, %v688
        %v690 = vpop.f32.mrf.mxu0
        %v691 = vadd.f32 0.0, %v690
        %692 = vdwg.mxu0
        %v693 = vadd.f32 %v340, %v615
        %v694 = vadd.f32 %v341, %v617
        %v695 = vadd.f32 %v342, %v619
        %v696 = vadd.f32 %v343, %v621
        %v697 = vadd.f32 %v344, %v625
        %v698 = vadd.f32 %v345, %v627
        %v699 = vadd.f32 %v346, %v629
        %v700 = vadd.f32 %v347, %v631
        %v701 = vadd.f32 %v348, %v635
        %v702 = vadd.f32 %v349, %v637
        %v703 = vadd.f32 %v350, %v639
        %v704 = vadd.f32 %v351, %v641
        %v705 = vadd.f32 %v352, %v645
        %v706 = vadd.f32 %v353, %v647
        %v707 = vadd.f32 %v354, %v649
        %v708 = vadd.f32 %v355, %v651
        %v709 = vadd.f32 %v356, %v655
        %v710 = vadd.f32 %v357, %v657
        %v711 = vadd.f32 %v358, %v659
        %v712 = vadd.f32 %v359, %v661
        %v713 = vadd.f32 %v360, %v665
        %v714 = vadd.f32 %v361, %v667
        %v715 = vadd.f32 %v362, %v669
        %v716 = vadd.f32 %v363, %v671
        %v717 = vadd.f32 %v364, %v675
        %v718 = vadd.f32 %v365, %v677
        %v719 = vadd.f32 %v366, %v679
        %v720 = vadd.f32 %v367, %v681
        %v721 = vadd.f32 %v368, %v685
        %v722 = vadd.f32 %v369, %v687
        %v723 = vadd.f32 %v370, %v689
        %v724 = vadd.f32 %v371, %v691
        %725 = vst [vmem:[#allocation2] sm:$0xff] %v693
        %726 = vst [vmem:[#allocation2 + $0x8] sm:$0xff] %v694
        %727 = vst [vmem:[#allocation2 + $0x10] sm:$0xff] %v695
        %728 = vst [vmem:[#allocation2 + $0x18] sm:$0xff] %v696
        %729 = vst [vmem:[#allocation2 + $0x20] sm:$0xff] %v697
        %730 = vst [vmem:[#allocation2 + $0x28] sm:$0xff] %v698
        %731 = vst [vmem:[#allocation2 + $0x30] sm:$0xff] %v699
        %732 = vst [vmem:[#allocation2 + $0x38] sm:$0xff] %v700
        %733 = vst [vmem:[#allocation2 + $0x40] sm:$0xff] %v701
        %734 = vst [vmem:[#allocation2 + $0x48] sm:$0xff] %v702
        %735 = vst [vmem:[#allocation2 + $0x50] sm:$0xff] %v703
        %736 = vst [vmem:[#allocation2 + $0x58] sm:$0xff] %v704
        %737 = vst [vmem:[#allocation2 + $0x60] sm:$0xff] %v705
        %738 = vst [vmem:[#allocation2 + $0x68] sm:$0xff] %v706
        %739 = vst [vmem:[#allocation2 + $0x70] sm:$0xff] %v707
        %740 = vst [vmem:[#allocation2 + $0x78] sm:$0xff] %v708
        %741 = vst [vmem:[#allocation2 + $0x80] sm:$0xff] %v709
        %742 = vst [vmem:[#allocation2 + $0x88] sm:$0xff] %v710
        %743 = vst [vmem:[#allocation2 + $0x90] sm:$0xff] %v711
        %744 = vst [vmem:[#allocation2 + $0x98] sm:$0xff] %v712
        %745 = vst [vmem:[#allocation2 + $0xa0] sm:$0xff] %v713
        %746 = vst [vmem:[#allocation2 + $0xa8] sm:$0xff] %v714
        %747 = vst [vmem:[#allocation2 + $0xb0] sm:$0xff] %v715
        %748 = vst [vmem:[#allocation2 + $0xb8] sm:$0xff] %v716
        %749 = vst [vmem:[#allocation2 + $0xc0] sm:$0xff] %v717
        %750 = vst [vmem:[#allocation2 + $0xc8] sm:$0xff] %v718
        %751 = vst [vmem:[#allocation2 + $0xd0] sm:$0xff] %v719
        %752 = vst [vmem:[#allocation2 + $0xd8] sm:$0xff] %v720
        %753 = vst [vmem:[#allocation2 + $0xe0] sm:$0xff] %v721
        %754 = vst [vmem:[#allocation2 + $0xe8] sm:$0xff] %v722
        %755 = vst [vmem:[#allocation2 + $0xf0] sm:$0xff] %v723
        %756 = vst [vmem:[#allocation2 + $0xf8] sm:$0xff] %v724
        // Predicated region
        $region53: #{tpu_custom_call.1} parent=35 // pred_check
          %p757 = pneg %p266
        $region54: #{tpu_custom_call.1} parent=35 // pred_check_branch
          %759 = sbr.rel (%p757) target = $region56
        $region55: #{tpu_custom_call.1} parent=35 // pred_region
          %v760 = vld [vmem:[#allocation2] sm:$0xff]
          %v761 = vld [vmem:[#allocation2 + $0x8] sm:$0xff]
          %v762 = vld [vmem:[#allocation2 + $0x10] sm:$0xff]
          %v763 = vld [vmem:[#allocation2 + $0x18] sm:$0xff]
          %v764 = vld [vmem:[#allocation2 + $0x20] sm:$0xff]
          %v765 = vld [vmem:[#allocation2 + $0x28] sm:$0xff]
          %v766 = vld [vmem:[#allocation2 + $0x30] sm:$0xff]
          %v767 = vld [vmem:[#allocation2 + $0x38] sm:$0xff]
          %v768 = vld [vmem:[#allocation2 + $0x40] sm:$0xff]
          %v769 = vld [vmem:[#allocation2 + $0x48] sm:$0xff]
          %v770 = vld [vmem:[#allocation2 + $0x50] sm:$0xff]
          %v771 = vld [vmem:[#allocation2 + $0x58] sm:$0xff]
          %v772 = vld [vmem:[#allocation2 + $0x60] sm:$0xff]
          %v773 = vld [vmem:[#allocation2 + $0x68] sm:$0xff]
          %v774 = vld [vmem:[#allocation2 + $0x70] sm:$0xff]
          %v775 = vld [vmem:[#allocation2 + $0x78] sm:$0xff]
          %v776 = vld [vmem:[#allocation2 + $0x80] sm:$0xff]
          %v777 = vld [vmem:[#allocation2 + $0x88] sm:$0xff]
          %v778 = vld [vmem:[#allocation2 + $0x90] sm:$0xff]
          %v779 = vld [vmem:[#allocation2 + $0x98] sm:$0xff]
          %v780 = vld [vmem:[#allocation2 + $0xa0] sm:$0xff]
          %v781 = vld [vmem:[#allocation2 + $0xa8] sm:$0xff]
          %v782 = vld [vmem:[#allocation2 + $0xb0] sm:$0xff]
          %v783 = vld [vmem:[#allocation2 + $0xb8] sm:$0xff]
          %v784 = vld [vmem:[#allocation2 + $0xc0] sm:$0xff]
          %v785 = vld [vmem:[#allocation2 + $0xc8] sm:$0xff]
          %v786 = vld [vmem:[#allocation2 + $0xd0] sm:$0xff]
          %v787 = vld [vmem:[#allocation2 + $0xd8] sm:$0xff]
          %v788 = vld [vmem:[#allocation2 + $0xe0] sm:$0xff]
          %v789 = vld [vmem:[#allocation2 + $0xe8] sm:$0xff]
          %v790 = vld [vmem:[#allocation2 + $0xf0] sm:$0xff]
          %v791 = vld [vmem:[#allocation2 + $0xf8] sm:$0xff]
          %v792 = vpack.c.bf16 %v762, %v760
          %v793 = vpack.c.bf16 %v763, %v761
          %v794 = vpack.c.bf16 %v766, %v764
          %v795 = vpack.c.bf16 %v767, %v765
          %v796 = vpack.c.bf16 %v770, %v768
          %v797 = vpack.c.bf16 %v771, %v769
          %v798 = vpack.c.bf16 %v774, %v772
          %v799 = vpack.c.bf16 %v775, %v773
          %v800 = vpack.c.bf16 %v778, %v776
          %v801 = vpack.c.bf16 %v779, %v777
          %v802 = vpack.c.bf16 %v782, %v780
          %v803 = vpack.c.bf16 %v783, %v781
          %v804 = vpack.c.bf16 %v786, %v784
          %v805 = vpack.c.bf16 %v787, %v785
          %v806 = vpack.c.bf16 %v790, %v788
          %v807 = vpack.c.bf16 %v791, %v789
          %v808 = vld [vmem:[#allocation8] sm:$0xf]
          %v809 = vld [vmem:[#allocation8 + $0x4] sm:$0xf]
          %v810 = vld [vmem:[#allocation8 + $0x8] sm:$0xf]
          %v811 = vld [vmem:[#allocation8 + $0xc] sm:$0xf]
          %v812 = vld [vmem:[#allocation8 + $0x10] sm:$0xf]
          %v813 = vld [vmem:[#allocation8 + $0x14] sm:$0xf]
          %v814 = vld [vmem:[#allocation8 + $0x18] sm:$0xf]
          %v815 = vld [vmem:[#allocation8 + $0x1c] sm:$0xf]
          %v816 = vld [vmem:[#allocation8 + $0x20] sm:$0xf]
          %v817 = vld [vmem:[#allocation8 + $0x24] sm:$0xf]
          %v818 = vld [vmem:[#allocation8 + $0x28] sm:$0xf]
          %v819 = vld [vmem:[#allocation8 + $0x2c] sm:$0xf]
          %v820 = vld [vmem:[#allocation8 + $0x30] sm:$0xf]
          %v821 = vld [vmem:[#allocation8 + $0x34] sm:$0xf]
          %v822 = vld [vmem:[#allocation8 + $0x38] sm:$0xf]
          %v823 = vld [vmem:[#allocation8 + $0x3c] sm:$0xf]
          %v824 = vld [vmem:[#allocation8 + $0x40] sm:$0xf]
          %v825 = vld [vmem:[#allocation8 + $0x44] sm:$0xf]
          %v826 = vld [vmem:[#allocation8 + $0x48] sm:$0xf]
          %v827 = vld [vmem:[#allocation8 + $0x4c] sm:$0xf]
          %v828 = vld [vmem:[#allocation8 + $0x50] sm:$0xf]
          %v829 = vld [vmem:[#allocation8 + $0x54] sm:$0xf]
          %v830 = vld [vmem:[#allocation8 + $0x58] sm:$0xf]
          %v831 = vld [vmem:[#allocation8 + $0x5c] sm:$0xf]
          %v832 = vld [vmem:[#allocation8 + $0x60] sm:$0xf]
          %v833 = vld [vmem:[#allocation8 + $0x64] sm:$0xf]
          %v834 = vld [vmem:[#allocation8 + $0x68] sm:$0xf]
          %v835 = vld [vmem:[#allocation8 + $0x6c] sm:$0xf]
          %v836 = vld [vmem:[#allocation8 + $0x70] sm:$0xf]
          %v837 = vld [vmem:[#allocation8 + $0x74] sm:$0xf]
          %v838 = vld [vmem:[#allocation8 + $0x78] sm:$0xf]
          %v839 = vld [vmem:[#allocation8 + $0x7c] sm:$0xf]
          %v840 = vld [vmem:[%s3] sm:$0x1]
          %v842 = vlaneseq
          %v843 = vshrl.u32 %v842, 7
          %v844 = vsub.s32 0, %v843
          %v845 = vrot.slane %v840, %v844
          %v879 = vunpack.c.l.b16 %v808
          %v880 = vunpack.c.l.b16 %v809
          %v881 = vunpack.c.l.b16 %v810
          %v882 = vunpack.c.l.b16 %v811
          %v883 = vunpack.c.l.b16 %v812
          %v884 = vunpack.c.l.b16 %v813
          %v885 = vunpack.c.l.b16 %v814
          %v886 = vunpack.c.l.b16 %v815
          %v887 = vunpack.c.l.b16 %v816
          %v888 = vunpack.c.l.b16 %v817
          %v889 = vunpack.c.l.b16 %v818
          %v890 = vunpack.c.l.b16 %v819
          %v891 = vunpack.c.l.b16 %v820
          %v892 = vunpack.c.l.b16 %v821
          %v893 = vunpack.c.l.b16 %v822
          %v894 = vunpack.c.l.b16 %v823
          %v895 = vunpack.c.l.b16 %v824
          %v896 = vunpack.c.l.b16 %v825
          %v897 = vunpack.c.l.b16 %v826
          %v898 = vunpack.c.l.b16 %v827
          %v899 = vunpack.c.l.b16 %v828
          %v900 = vunpack.c.l.b16 %v829
          %v901 = vunpack.c.l.b16 %v830
          %v902 = vunpack.c.l.b16 %v831
          %v903 = vunpack.c.l.b16 %v832
          %v904 = vunpack.c.l.b16 %v833
          %v905 = vunpack.c.l.b16 %v834
          %v906 = vunpack.c.l.b16 %v835
          %v907 = vunpack.c.l.b16 %v836
          %v908 = vunpack.c.l.b16 %v837
          %v909 = vunpack.c.l.b16 %v838
          %v910 = vunpack.c.l.b16 %v839
          %v911 = vpack.c.b16 %v880, %v879
          %v912 = vpack.c.b16 %v882, %v881
          %v913 = vpack.c.b16 %v884, %v883
          %v914 = vpack.c.b16 %v886, %v885
          %v915 = vpack.c.b16 %v888, %v887
          %v916 = vpack.c.b16 %v890, %v889
          %v917 = vpack.c.b16 %v892, %v891
          %v918 = vpack.c.b16 %v894, %v893
          %v919 = vpack.c.b16 %v896, %v895
          %v920 = vpack.c.b16 %v898, %v897
          %v921 = vpack.c.b16 %v900, %v899
          %v922 = vpack.c.b16 %v902, %v901
          %v923 = vpack.c.b16 %v904, %v903
          %v924 = vpack.c.b16 %v906, %v905
          %v925 = vpack.c.b16 %v908, %v907
          %v926 = vpack.c.b16 %v910, %v909
          %943 = vmatprep.subr.bf16.mxu0 0
          %944 = vmatpush1.bf16.msra.mxu0 %v918
          %945 = vmatprep.subr.bf16.mxu0 0
          %946 = vmatpush1.bf16.msra.mxu0 %v917
          %947 = vmatprep.subr.bf16.mxu0 0
          %948 = vmatpush1.bf16.msra.mxu0 %v916
          %949 = vmatprep.subr.bf16.mxu0 0
          %950 = vmatpush1.bf16.msra.mxu0 %v915
          %951 = vmatprep.subr.bf16.mxu0 0
          %952 = vmatpush1.bf16.msra.mxu0 %v914
          %953 = vmatprep.subr.bf16.mxu0 0
          %954 = vmatpush1.bf16.msra.mxu0 %v913
          %955 = vmatprep.subr.bf16.mxu0 0
          %956 = vmatpush1.bf16.msra.mxu0 %v912
          %957 = vmatprep.subr.bf16.mxu0 0
          %958 = vmatpush1.bf16.msra.mxu0 %v911
          %959 = vmatprep.subr.bf16.mxu0 0
          %960 = vmatpush2.bf16.msra.mxu0 %v926
          %961 = vmatprep.subr.bf16.mxu0 0
          %962 = vmatpush2.bf16.msra.mxu0 %v925
          %963 = vmatprep.subr.bf16.mxu0 0
          %964 = vmatpush2.bf16.msra.mxu0 %v924
          %965 = vmatprep.subr.bf16.mxu0 0
          %966 = vmatpush2.bf16.msra.mxu0 %v923
          %967 = vmatprep.subr.bf16.mxu0 0
          %968 = vmatpush2.bf16.msra.mxu0 %v922
          %969 = vmatprep.subr.bf16.mxu0 0
          %970 = vmatpush2.bf16.msra.mxu0 %v921
          %971 = vmatprep.subr.bf16.mxu0 0
          %972 = vmatpush2.bf16.msra.mxu0 %v920
          %973 = vmatprep.subr.bf16.mxu0 0
          %974 = vmatpush2.bf16.msra.mxu0 %v919
          %975 = vmatprep.mubr.bf16.mxu0 %v793
          %976 = vmatmul.mubr.bf16.gmra.mxu0 %v792
          %v977 = vpop.f32.mrf.mxu0
          %v978 = vadd.f32 %v845, %v977
          %v979 = vpop.f32.mrf.mxu0
          %v980 = vpop.f32.mrf.mxu0
          %v981 = vadd.f32 %v845, %v980
          %v982 = vpop.f32.mrf.mxu0
          %983 = vmatprep.mubr.bf16.mxu0 %v795
          %984 = vmatmul.mubr.bf16.gmra.mxu0 %v794
          %v985 = vpop.f32.mrf.mxu0
          %v986 = vadd.f32 %v845, %v985
          %v987 = vpop.f32.mrf.mxu0
          %v988 = vpop.f32.mrf.mxu0
          %v989 = vadd.f32 %v845, %v988
          %v990 = vpop.f32.mrf.mxu0
          %991 = vmatprep.mubr.bf16.mxu0 %v797
          %992 = vmatmul.mubr.bf16.gmra.mxu0 %v796
          %v993 = vpop.f32.mrf.mxu0
          %v994 = vadd.f32 %v845, %v993
          %v995 = vpop.f32.mrf.mxu0
          %v996 = vpop.f32.mrf.mxu0
          %v997 = vadd.f32 %v845, %v996
          %v998 = vpop.f32.mrf.mxu0
          %999 = vmatprep.mubr.bf16.mxu0 %v799
          %1000 = vmatmul.mubr.bf16.gmra.mxu0 %v798
          %v1001 = vpop.f32.mrf.mxu0
          %v1002 = vadd.f32 %v845, %v1001
          %v1003 = vpop.f32.mrf.mxu0
          %v1004 = vpop.f32.mrf.mxu0
          %v1005 = vadd.f32 %v845, %v1004
          %v1006 = vpop.f32.mrf.mxu0
          %1007 = vmatprep.mubr.bf16.mxu0 %v801
          %1008 = vmatmul.mubr.bf16.gmra.mxu0 %v800
          %v1009 = vpop.f32.mrf.mxu0
          %v1010 = vadd.f32 %v845, %v1009
          %v1011 = vpop.f32.mrf.mxu0
          %v1012 = vpop.f32.mrf.mxu0
          %v1013 = vadd.f32 %v845, %v1012
          %v1014 = vpop.f32.mrf.mxu0
          %1015 = vmatprep.mubr.bf16.mxu0 %v803
          %1016 = vmatmul.mubr.bf16.gmra.mxu0 %v802
          %v1017 = vpop.f32.mrf.mxu0
          %v1018 = vadd.f32 %v845, %v1017
          %v1019 = vpop.f32.mrf.mxu0
          %v1020 = vpop.f32.mrf.mxu0
          %v1021 = vadd.f32 %v845, %v1020
          %v1022 = vpop.f32.mrf.mxu0
          %1023 = vmatprep.mubr.bf16.mxu0 %v805
          %1024 = vmatmul.mubr.bf16.gmra.mxu0 %v804
          %v1025 = vpop.f32.mrf.mxu0
          %v1026 = vadd.f32 %v845, %v1025
          %v1027 = vpop.f32.mrf.mxu0
          %v1028 = vpop.f32.mrf.mxu0
          %v1029 = vadd.f32 %v845, %v1028
          %v1030 = vpop.f32.mrf.mxu0
          %1031 = vmatprep.mubr.bf16.mxu0 %v807
          %1032 = vmatmul.mubr.bf16.gmra.mxu0 %v806
          %v1033 = vpop.f32.mrf.mxu0
          %v1034 = vadd.f32 %v845, %v1033
          %v1035 = vpop.f32.mrf.mxu0
          %v1036 = vpop.f32.mrf.mxu0
          %v1037 = vadd.f32 %v845, %v1036
          %v1038 = vpop.f32.mrf.mxu0
          %1039 = vdwg.mxu0
          %v1040 = vmax.f32 %v978, 0.0
          %v1041 = vmax.f32 %v981, 0.0
          %v1042 = vmax.f32 %v986, 0.0
          %v1043 = vmax.f32 %v989, 0.0
          %v1044 = vmax.f32 %v994, 0.0
          %v1045 = vmax.f32 %v997, 0.0
          %v1046 = vmax.f32 %v1002, 0.0
          %v1047 = vmax.f32 %v1005, 0.0
          %v1048 = vmax.f32 %v1010, 0.0
          %v1049 = vmax.f32 %v1013, 0.0
          %v1050 = vmax.f32 %v1018, 0.0
          %v1051 = vmax.f32 %v1021, 0.0
          %v1052 = vmax.f32 %v1026, 0.0
          %v1053 = vmax.f32 %v1029, 0.0
          %v1054 = vmax.f32 %v1034, 0.0
          %v1055 = vmax.f32 %v1037, 0.0
          %1056 = vst [vmem:[%s261] sm:$0xff] %v1040
          %1057 = vst [vmem:[%s261 + $0x8] sm:$0xff] %v1041
          %1058 = vst [vmem:[%s261 + $0x10] sm:$0xff] %v1042
          %1059 = vst [vmem:[%s261 + $0x18] sm:$0xff] %v1043
          %1060 = vst [vmem:[%s261 + $0x20] sm:$0xff] %v1044
          %1061 = vst [vmem:[%s261 + $0x28] sm:$0xff] %v1045
          %1062 = vst [vmem:[%s261 + $0x30] sm:$0xff] %v1046
          %1063 = vst [vmem:[%s261 + $0x38] sm:$0xff] %v1047
          %1064 = vst [vmem:[%s261 + $0x40] sm:$0xff] %v1048
          %1065 = vst [vmem:[%s261 + $0x48] sm:$0xff] %v1049
          %1066 = vst [vmem:[%s261 + $0x50] sm:$0xff] %v1050
          %1067 = vst [vmem:[%s261 + $0x58] sm:$0xff] %v1051
          %1068 = vst [vmem:[%s261 + $0x60] sm:$0xff] %v1052
          %1069 = vst [vmem:[%s261 + $0x68] sm:$0xff] %v1053
          %1070 = vst [vmem:[%s261 + $0x70] sm:$0xff] %v1054
          %1071 = vst [vmem:[%s261 + $0x78] sm:$0xff] %v1055
        $region56: #{tpu_custom_call.1} parent=35 // pred_fallthru
          _
        %s1072 = sand.u32 %s133, 1
        %s1073 = scalar_lea.sflag [#allocation5], %s1072
        %s1074 = sand.u32 %s133, 1
        %s1075 = smul.addr %s1074, 128
        %s1076 = scalar_lea.vmem [#allocation9], %s1075
        // Predicated region
        $region57: #{tpu_custom_call.1} parent=35 // pred_check
          %p1077 = pneg %p143
        $region58: #{tpu_custom_call.1} parent=35 // pred_check_branch
          %1079 = sbr.rel (%p1077) target = $region60
        $region59: #{tpu_custom_call.1} parent=35 // pred_region
          %s1080 = smul.u32 16, %s26
          %s1082 = ssub.s32 2048, 2048
          %1083 = vsyncadd %s1073, %s1082
          %s1084 = smul.addr %s1080, 128
          %s1085 = scalar_lea.hbm %s4, %s1084
          %s1086 = sshll.u32 %s1076, 4
          %s1087 = int_to_ptr.vmem [resolvable:$true] %s1086
          %1092 = dma.vmem_to_hbm [thread:$0]  %s1087, 2048, %s1085, %s1073, 128, 128, 8
        $region60: #{tpu_custom_call.1} parent=35 // pred_fallthru
          _
      $region36: #{tpu_custom_call.1} parent=5 // pred_fallthru
        _
      %p1093 = scmp.le.s32.totalorder 2, %s17
      // Predicated region
      $region61: #{tpu_custom_call.1} parent=5 // pred_check
        %p1094 = pneg %p1093
      $region62: #{tpu_custom_call.1} parent=5 // pred_check_branch
        %1096 = sbr.rel (%p1094) target = $region64
      $region63: #{tpu_custom_call.1} parent=5 // pred_region
        %s1097 = ssub.s32 %s17, 2
        // Predicated region
        $region65: #{tpu_custom_call.1} parent=63 // pred_check
          %p1098 = pneg %p149
        $region66: #{tpu_custom_call.1} parent=63 // pred_check_branch
          %1100 = sbr.rel (%p1098) target = $region68
        $region67: #{tpu_custom_call.1} parent=63 // pred_region
          %s1101 = sand.u32 %s134, 1
          %s1102 = scalar_lea.sflag [#allocation5], %s1101
          %s1103 = sand.u32 %s134, 1
          %s1104 = smul.addr %s1103, 128
          %s1105 = scalar_lea.vmem [#allocation9], %s1104
          %1106 = dma.done %s1102, 2048
        $region68: #{tpu_custom_call.1} parent=63 // pred_fallthru
          _
      $region64: #{tpu_custom_call.1} parent=5 // pred_fallthru
        _
    $region6: #{tpu_custom_call.1} parent=1 // loop_footer
      %s21 = sadd.s32 1, %s17
    $region7: #{tpu_custom_call.1} parent=1 // loop_footer_branch
      %16 = sbr.rel target = $region3
    $region8: #{tpu_custom_call.1} parent=1 // loop_exit
      _
    %1107 = vsyncpa [#allocation4], 1
    %s1108 = scalar_lea.sflag [#allocation4], 1
    %1109 = vsyncpa %s1108, 1
    %1110 = vsyncpa [#allocation7], 1
    %1111 = vsyncpa [#allocation5], 1
    %s1112 = scalar_lea.sflag [#allocation5], 1
    %1113 = vsyncpa %s1112, 1

</llo_original>
